<compile_context>
chip_gen: v6e
topology: v6e:2x2x1
jax: 0.10.0
libtpu: 0.0.40
codegen_flags: <defaults>
</compile_context>

<pallas_src>
import jax
import jax.numpy as jnp
from jax.experimental import pallas as pl
from jax.experimental.pallas import tpu as pltpu

MODES = ["SG", "SC", "MG", "MC"]

_TARGET_BLOCK_BYTES = 2 * 1024 * 1024  # ~2 MiB/block: big enough to hit HBM
                                       # roofline, small enough for v7x VMEM
                                       # with double-buffered in/out blocks.


def _soft_thresh_kernel(x_ref, lbda_ref, o_ref):
    # x_ref:    (TR, TL) tile of the flattened (N*C, H*W) input
    # lbda_ref: (TR, 1) per-row lambda column (same dtype as x), broadcasts
    #           across the lane axis.
    x = x_ref[...]
    lbda = lbda_ref[...]
    pos = jnp.maximum(x - lbda, 0)
    neg = jnp.maximum(-x - lbda, 0)
    o_ref[...] = (pos - neg).astype(o_ref.dtype)


def _choose_block(R, L, itemsize):
    """Pick (TR, TL) giving ~2 MiB lane-dense blocks that satisfy (8,128) rules."""
    # Lane tile: only split the lane axis if a single 8-row slab would blow the
    # budget AND the split can stay a multiple of 128 (otherwise keep full L,
    # which is always a legal block dim).
    if L % 128 == 0 and 8 * L * itemsize > _TARGET_BLOCK_BYTES:
        TL = max(128, (_TARGET_BLOCK_BYTES // (8 * itemsize)) // 128 * 128)
        TL = min(TL, L)
    else:
        TL = L
    # Row tile: multiple of 8, or the full row extent.
    rows = max(8, (_TARGET_BLOCK_BYTES // max(1, TL * itemsize)) // 8 * 8)
    TR = R if rows >= R else rows
    return TR, TL


def soft_thresholding_pallas(x, lbda):
    """x: (N, C, H, W); lbda: (1, C, 1, 1) or (1, 1, 1, 1)."""
    N, C, H, W = x.shape
    R, L = N * C, H * W

    x2 = x.reshape(R, L)
    # Per-row lambda column (one lambda per (n, c) plane), cast to x's dtype so
    # the in-kernel math and the output store stay in a single dtype.
    lbda_row = (
        jnp.broadcast_to(lbda.reshape(1, -1), (N, C))
        .reshape(R, 1)
        .astype(x.dtype)
    )

    itemsize = jnp.dtype(x.dtype).itemsize
    TR, TL = _choose_block(R, L, itemsize)
    grid = (pl.cdiv(R, TR), pl.cdiv(L, TL))

    out2 = pl.pallas_call(
        _soft_thresh_kernel,
        out_shape=jax.ShapeDtypeStruct((R, L), x.dtype),
        grid=grid,
        in_specs=[
            pl.BlockSpec((TR, TL), lambda i, j: (i, j)),
            pl.BlockSpec((TR, 1), lambda i, j: (i, 0)),
        ],
        out_specs=pl.BlockSpec((TR, TL), lambda i, j: (i, j)),
        compiler_params=pltpu.CompilerParams(
            dimension_semantics=("parallel", "parallel")
        ),
    )(x2, lbda_row)

    return out2.reshape(N, C, H, W)


class SoftThresholding:
    """JAX/Pallas port of t3sc SoftThresholding (deterministic init)."""

    def __init__(self, mode, lbda_init, code_size=None, K=None):
        assert mode in MODES, f"Mode {mode!r} not recognized"
        self.mode = mode
        if mode[1] == "C":
            lbda_shape = (1, code_size, 1, 1)
        else:
            lbda_shape = (1, 1, 1, 1)
        if mode[0] == "M":
            # K independent lambdas (ParameterList) -> stacked (K, *lbda_shape)
            self.lbda = jnp.stack(
                [lbda_init * jnp.ones(lbda_shape, jnp.float32) for _ in range(K)]
            )
        else:
            self.lbda = lbda_init * jnp.ones(lbda_shape, jnp.float32)

    def __call__(self, x, k=None):
        if self.mode[0] == "M":
            lbda = self.lbda[k]
        else:
            lbda = self.lbda
        return soft_thresholding_pallas(x, lbda)


def _reference(x, lbda):
    return jnp.maximum(x - lbda, 0.0) - jnp.maximum(-x - lbda, 0.0)


if __name__ == "__main__":
    key = jax.random.PRNGKey(0)
    N, C, H, W = 2, 4, 16, 16
    x = jax.random.normal(key, (N, C, H, W), dtype=jnp.float32)

    ok = True

    # 'SC' mode: per-channel lambda
    st_sc = SoftThresholding("SC", lbda_init=0.1, code_size=C)
    y_sc = jax.block_until_ready(st_sc(x))
    ok &= bool(jnp.allclose(y_sc, _reference(x, st_sc.lbda), atol=1e-6))

    # 'SG' mode: global scalar lambda
    st_sg = SoftThresholding("SG", lbda_init=0.25)
    y_sg = jax.block_until_ready(st_sg(x))
    ok &= bool(jnp.allclose(y_sg, _reference(x, st_sg.lbda), atol=1e-6))

    # 'MC' mode: K per-channel lambdas, pick k=1
    st_mc = SoftThresholding("MC", lbda_init=0.05, code_size=C, K=3)
    y_mc = jax.block_until_ready(st_mc(x, k=1))
    ok &= bool(jnp.allclose(y_mc, _reference(x, st_mc.lbda[1]), atol=1e-6))

    # bf16 path exercises the dtype-consistency fix
    st_bf = SoftThresholding("SC", lbda_init=0.1, code_size=C)
    xb = x.astype(jnp.bfloat16)
    y_bf = jax.block_until_ready(st_bf(xb))
    ref_bf = _reference(xb, st_bf.lbda.astype(jnp.bfloat16))
    ok &= bool(jnp.allclose(y_bf.astype(jnp.float32), ref_bf.astype(jnp.float32),
                            atol=1e-2))

    if ok:
        print("KERNEL_OK")
    else:
        print("KERNEL_MISMATCH")
</pallas_src>

<mosaic_0001>
module attributes {stable_mosaic.version = 11 : i64} {
  func.func @_soft_thresh_kernel(%arg0: i32, %arg1: i32, %arg2: memref<8x256xf32, #tpu.memory_space<vmem>>, %arg3: memref<8x1xf32, #tpu.memory_space<vmem>>, %arg4: memref<8x256xf32, #tpu.memory_space<vmem>>) attributes {dimension_semantics = [#tpu.dimension_semantics<parallel>, #tpu.dimension_semantics<parallel>], iteration_bounds = array<i64: 1, 1>, scalar_prefetch = 0 : i64, scratch_operands = 0 : i64, tpu.core_type = #tpu.core_type<tc>, window_params = [{transform_indices = @transform_0, window_bounds = array<i64: 8, 256>}, {transform_indices = @transform_1, window_bounds = array<i64: 8, 1>}, {transform_indices = @transform_2, window_bounds = array<i64: 8, 256>}]} {
    %c0 = arith.constant 0 : index
    %c0_0 = arith.constant 0 : index
    %0 = vector.load %arg2[%c0, %c0_0] : memref<8x256xf32, #tpu.memory_space<vmem>>, vector<8x256xf32>
    %c0_1 = arith.constant 0 : index
    %c0_2 = arith.constant 0 : index
    %1 = vector.load %arg3[%c0_1, %c0_2] : memref<8x1xf32, #tpu.memory_space<vmem>>, vector<8x1xf32>
    %2 = vector.broadcast %1 : vector<8x1xf32> to vector<8x256xf32>
    %3 = arith.subf %0, %2 : vector<8x256xf32>
    %cst = arith.constant 0.000000e+00 : f32
    %4 = vector.broadcast %cst : f32 to vector<8x256xf32>
    %5 = arith.maximumf %3, %4 : vector<8x256xf32>
    %cst_3 = arith.constant 0.000000e+00 : f32
    %6 = vector.broadcast %cst_3 : f32 to vector<8x256xf32>
    %7 = arith.subf %6, %0 : vector<8x256xf32>
    %8 = vector.broadcast %1 : vector<8x1xf32> to vector<8x256xf32>
    %9 = arith.subf %7, %8 : vector<8x256xf32>
    %cst_4 = arith.constant 0.000000e+00 : f32
    %10 = vector.broadcast %cst_4 : f32 to vector<8x256xf32>
    %11 = arith.maximumf %9, %10 : vector<8x256xf32>
    %12 = arith.subf %5, %11 : vector<8x256xf32>
    %c0_5 = arith.constant 0 : index
    %c0_6 = arith.constant 0 : index
    %13 = vector.load %arg4[%c0_5, %c0_6] : memref<8x256xf32, #tpu.memory_space<vmem>>, vector<8x256xf32>
    tpu.vector_store %arg4[%c0_5, %c0_6], %12 {strides = array<i32>} : memref<8x256xf32, #tpu.memory_space<vmem>>, vector<8x256xf32>,
    return
  }
  func.func @transform_0(%arg0: i32, %arg1: i32) -> (i32, i32) {
    %c0_i32 = arith.constant 0 : i32
    return %arg0, %arg1 : i32, i32
  }
  func.func @transform_1(%arg0: i32, %arg1: i32) -> (i32, i32) {
    %c0_i32 = arith.constant 0 : i32
    %c0_i32_0 = arith.constant 0 : i32
    return %arg0, %c0_i32 : i32, i32
  }
  func.func @transform_2(%arg0: i32, %arg1: i32) -> (i32, i32) {
    %c0_i32 = arith.constant 0 : i32
    return %arg0, %arg1 : i32, i32
  }
}

</mosaic_0001>

<llo_original>
// kernel: tpu_custom_call.1
$region0: #{tpu_custom_call.1}
  #allocation0 [shape = 'u32[]', space=smem, size = 0x4, offset = 0x4, fixed_abs, tag = 'smem constant byte address 0x4 - core index']
  #allocation1 [shape = 'u32[144,128]{1,0:T(1,128)}', space=vmem, size = 0x12000, scoped, tag = 'internal scratch']
  %s0 = inlined_call_operand.hbm [shape: f32[8,256], index: 0, kind: input, shape index: {}]
  %s1 = inlined_call_operand.vmem [shape: f32[8,1], index: 1, kind: input, shape index: {}]
  %s2 = inlined_call_operand.hbm [shape: f32[8,256], index: 2, kind: output, shape index: {}]
  %s3 = sld [smem:[#allocation0]]
  $region22: #{tpu_custom_call.1} parent=0
    _
  %s5 = ssub.s32 1, %s3
  %s6 = scalar_select 0, %s5, %s3
  $region1: #{tpu_custom_call.1} parent=0
    #allocation2 [shape = 'u8[8192]{0}', space=vmem, size = 0x2000, scoped, tag = 'input window, operand 0, single buffered']
    #allocation3 [shape = 's32[1]{0}', space=sflag, size = 0x4, scoped, tag = 'scoped memory for tpu_custom_call.1']
    #allocation4 [shape = 's32[1]{0}', space=sflag, size = 0x4, scoped, tag = 'scoped memory for tpu_custom_call.1']
    #allocation5 [shape = 'u8[8192]{0}', space=vmem, size = 0x2000, scoped, tag = 'output window, operand 0, single buffered']
    %7 = vsyncpa [#allocation3], 0
    %8 = vsyncpa [#allocation4], 0
    // Predicated region
    $region2: #{tpu_custom_call.1} parent=1 // pred_check
      _
    $region3: #{tpu_custom_call.1} parent=1 // pred_check_branch
      %10 = sbr.rel (0) target = $region5
    $region4: #{tpu_custom_call.1} parent=1 // pred_region
      %s12 = ssub.s32 256, 256
      %13 = vsyncadd [#allocation3], %s12
      %s15 = sshll.u32 [#allocation2], 4
      %s16 = int_to_ptr.vmem [resolvable:$true] %s15
      %18 = dma.hbm_to_vmem [thread:$0]  %s0, 256, %s16, [#allocation3]
    $region5: #{tpu_custom_call.1} parent=1 // pred_fallthru
      _
    // Predicated region
    $region6: #{tpu_custom_call.1} parent=1 // pred_check
      _
    $region7: #{tpu_custom_call.1} parent=1 // pred_check_branch
      %20 = sbr.rel (0) target = $region9
    $region8: #{tpu_custom_call.1} parent=1 // pred_region
      _
    $region9: #{tpu_custom_call.1} parent=1 // pred_fallthru
      _
    // Predicated region
    $region10: #{tpu_custom_call.1} parent=1 // pred_check
      _
    $region11: #{tpu_custom_call.1} parent=1 // pred_check_branch
      %22 = sbr.rel (0) target = $region13
    $region12: #{tpu_custom_call.1} parent=1 // pred_region
      %23 = dma.done [#allocation3], 256
    $region13: #{tpu_custom_call.1} parent=1 // pred_fallthru
      _
    %v24 = vld [vmem:[#allocation2] sm:$0xff]
    %v25 = vld [vmem:[#allocation2 + $0x8] sm:$0xff]
    %v26 = vld [vmem:[%s1] sm:$0xff]
    %28 = vset.pattern.permute.xlu0 0
    %29 = vperm.xlu0 %28, %v26
    %v30 = vpop.permute.xlu0 %29
    %v32 = vsub.f32 %v24, %v30
    %v33 = vsub.f32 %v25, %v30
    %v34 = vmax.f32 %v32, 0.0
    %v35 = vmax.f32 %v33, 0.0
    %v36 = vsub.f32 0.0, %v24
    %v37 = vsub.f32 0.0, %v25
    %v38 = vsub.f32 %v36, %v30
    %v39 = vsub.f32 %v37, %v30
    %v40 = vmax.f32 %v38, 0.0
    %v41 = vmax.f32 %v39, 0.0
    %v42 = vsub.f32 %v34, %v40
    %v43 = vsub.f32 %v35, %v41
    %44 = vst [vmem:[#allocation5] sm:$0xff] %v42
    %45 = vst [vmem:[#allocation5 + $0x8] sm:$0xff] %v43
    // Predicated region
    $region14: #{tpu_custom_call.1} parent=1 // pred_check
      _
    $region15: #{tpu_custom_call.1} parent=1 // pred_check_branch
      %47 = sbr.rel (0) target = $region17
    $region16: #{tpu_custom_call.1} parent=1 // pred_region
      %s49 = ssub.s32 256, 256
      %50 = vsyncadd [#allocation4], %s49
      %s52 = sshll.u32 [#allocation5], 4
      %s53 = int_to_ptr.vmem [resolvable:$true] %s52
      %55 = dma.vmem_to_hbm [thread:$0]  %s53, 256, %s2, [#allocation4]
    $region17: #{tpu_custom_call.1} parent=1 // pred_fallthru
      _
    // Predicated region
    $region18: #{tpu_custom_call.1} parent=1 // pred_check
      _
    $region19: #{tpu_custom_call.1} parent=1 // pred_check_branch
      %57 = sbr.rel (0) target = $region21
    $region20: #{tpu_custom_call.1} parent=1 // pred_region
      %58 = dma.done [#allocation4], 256
    $region21: #{tpu_custom_call.1} parent=1 // pred_fallthru
      _
    %59 = vsyncpa [#allocation3], 1
    %60 = vsyncpa [#allocation4], 1

</llo_original>
